<compile_context>
chip_gen: v7x
topology: tpu7x:2x2x1
jax: 0.10.0
libtpu: 0.0.40
codegen_flags: <defaults>
</compile_context>

<pallas_src>
import jax
import jax.numpy as jnp
from jax.experimental import pallas as pl
from jax.experimental.pallas import tpu as pltpu


def _scse_apply_kernel(x_ref, cse_ref, ws_ref, bs_ref, o_ref):
    # x_ref  : (1, C, T)  tile of the input: C on sublane, HW tile on lane
    # cse_ref: (1, C, 1)  precomputed per-channel sigmoid gate for this batch
    # ws_ref : (1, C)     sSE 1x1-conv weight (C -> 1), stored transposed
    # bs_ref : (1, 1)     sSE bias
    x = x_ref[0]                                    # (C, T)
    cse = cse_ref[0]                                # (C, 1) -> broadcasts over lanes

    # sSE spatial gate: lane-dense (1, C) @ (C, T) -> (1, T), broadcast over sublanes.
    sse = jax.nn.sigmoid(
        jnp.dot(ws_ref[...], x, preferred_element_type=jnp.float32) + bs_ref[...]
    )                                               # (1, T)

    # max(x*a, x*b) cannot be folded to x*max(a,b) (sign of x), keep both products.
    o_ref[0] = jnp.maximum(x * cse, x * sse).astype(o_ref.dtype)


def _pick_hw_tile(hw):
    # Largest lane-dense tile (multiple of 128) that divides HW; fall back to
    # the full extent (uses the "equal to full array dim" escape hatch).
    for t in (2048, 1024, 512, 256, 128):
        if hw % t == 0:
            return t
    return hw


def scse_module2(x_nchw, w1, b1, w2, b2, ws, bs):
    """x_nchw: (B, C, H, W). Parameters:
       w1 (C, Cr), b1 (Cr,), w2 (Cr, C), b2 (C,)  -- cSE MLP
       ws (C,), bs ()                              -- sSE 1x1 conv
    """
    B, C, H, W = x_nchw.shape
    HW = H * W
    x = x_nchw.reshape(B, C, HW)                    # free reshape, no transpose

    # ---- cSE channel gate, hoisted out of the per-tile kernel (tiny compute).
    gap = jnp.mean(x, axis=2)                       # (B, C)
    h = jnp.maximum(gap @ w1 + b1, 0.0)             # (B, Cr)
    cse = jax.nn.sigmoid(h @ w2 + b2)               # (B, C)
    cse = cse[:, :, None].astype(x.dtype)           # (B, C, 1)

    ws_t = ws.reshape(1, C).astype(x.dtype)         # (1, C)
    bs_ = bs.reshape(1, 1).astype(jnp.float32)      # (1, 1)

    T = _pick_hw_tile(HW)
    grid = (B, HW // T)

    out = pl.pallas_call(
        _scse_apply_kernel,
        out_shape=jax.ShapeDtypeStruct((B, C, HW), x.dtype),
        grid_spec=pl.GridSpec(
            grid=grid,
            in_specs=[
                pl.BlockSpec((1, C, T), lambda b, t: (b, 0, t)),
                pl.BlockSpec((1, C, 1), lambda b, t: (b, 0, 0)),
                pl.BlockSpec((1, C), lambda b, t: (0, 0)),
                pl.BlockSpec((1, 1), lambda b, t: (0, 0)),
            ],
            out_specs=pl.BlockSpec((1, C, T), lambda b, t: (b, 0, t)),
        ),
        compiler_params=pltpu.CompilerParams(
            dimension_semantics=("parallel", "parallel"),
            vmem_limit_bytes=64 * 1024 * 1024,
        ),
    )(x, cse, ws_t, bs_)

    return out.reshape(B, C, H, W)


def reference_jax(x, w1, b1, w2, b2, ws, bs):
    """Pure-JAX reference matching the PyTorch forward (NCHW)."""
    gap = jnp.mean(x, axis=(2, 3))                                   # (B, C)
    h = jnp.maximum(gap @ w1 + b1, 0.0)                              # (B, Cr)
    cse = jax.nn.sigmoid(h @ w2 + b2)[:, :, None, None]              # (B, C, 1, 1)
    sse = jax.nn.sigmoid(jnp.einsum("bchw,c->bhw", x, ws)[:, None] + bs)  # (B,1,H,W)
    return jnp.maximum(x * cse, x * sse)


if __name__ == "__main__":
    key = jax.random.PRNGKey(0)
    B, C, H, W = 2, 32, 16, 16
    reduction = 16
    Cr = C // reduction

    k = jax.random.split(key, 7)
    x = jax.random.normal(k[0], (B, C, H, W), dtype=jnp.float32)

    # nn.Conv2d(C, Cr, 1) -> stored as (C, Cr); nn.Conv2d(Cr, C, 1) -> (Cr, C);
    # nn.Conv2d(C, 1, 1)  -> stored as (C,).
    w1 = jax.random.normal(k[1], (C, Cr), dtype=jnp.float32) * 0.1
    b1 = jax.random.normal(k[2], (Cr,), dtype=jnp.float32) * 0.1
    w2 = jax.random.normal(k[3], (Cr, C), dtype=jnp.float32) * 0.1
    b2 = jax.random.normal(k[4], (C,), dtype=jnp.float32) * 0.1
    ws = jax.random.normal(k[5], (C,), dtype=jnp.float32) * 0.1
    bs = jax.random.normal(k[6], (), dtype=jnp.float32) * 0.1

    out = jax.block_until_ready(scse_module2(x, w1, b1, w2, b2, ws, bs))
    ref = reference_jax(x, w1, b1, w2, b2, ws, bs)

    assert out.shape == (B, C, H, W)
    assert jnp.allclose(out, ref, atol=1e-5, rtol=1e-5)

    print("KERNEL_OK")
</pallas_src>

<mosaic_0001>
module attributes {stable_mosaic.version = 11 : i64} {
  func.func @_scse_apply_kernel(%arg0: i32, %arg1: i32, %arg2: memref<1x32x256xf32, #tpu.memory_space<vmem>>, %arg3: memref<1x32x1xf32, #tpu.memory_space<vmem>>, %arg4: memref<1x32xf32, #tpu.memory_space<vmem>>, %arg5: memref<1x1xf32, #tpu.memory_space<vmem>>, %arg6: memref<1x32x256xf32, #tpu.memory_space<vmem>>) attributes {dimension_semantics = [#tpu.dimension_semantics<parallel>, #tpu.dimension_semantics<parallel>], iteration_bounds = array<i64: 2, 1>, scalar_prefetch = 0 : i64, scratch_operands = 0 : i64, tpu.core_type = #tpu.core_type<tc>, window_params = [{transform_indices = @transform_0, window_bounds = array<i64: 1, 32, 256>}, {transform_indices = @transform_1, window_bounds = array<i64: 1, 32, 1>}, {pipeline_mode = #tpu.pipeline_mode<synchronous>, transform_indices = @transform_2, window_bounds = array<i64: 1, 32>}, {pipeline_mode = #tpu.pipeline_mode<synchronous>, transform_indices = @transform_3, window_bounds = array<i64: 1, 1>}, {transform_indices = @transform_4, window_bounds = array<i64: 1, 32, 256>}]} {
    %c0 = arith.constant 0 : index
    %c0_0 = arith.constant 0 : index
    %c0_1 = arith.constant 0 : index
    %0 = vector.load %arg2[%c0, %c0_0, %c0_1] : memref<1x32x256xf32, #tpu.memory_space<vmem>>, vector<1x32x256xf32>
    %1 = vector.shape_cast %0 : vector<1x32x256xf32> to vector<32x256xf32>
    %c0_2 = arith.constant 0 : index
    %c0_3 = arith.constant 0 : index
    %c0_4 = arith.constant 0 : index
    %2 = vector.load %arg3[%c0_2, %c0_3, %c0_4] : memref<1x32x1xf32, #tpu.memory_space<vmem>>, vector<1x32x1xf32>
    %3 = vector.shape_cast %2 : vector<1x32x1xf32> to vector<32x1xf32>
    %c0_5 = arith.constant 0 : index
    %c0_6 = arith.constant 0 : index
    %4 = vector.load %arg4[%c0_5, %c0_6] : memref<1x32xf32, #tpu.memory_space<vmem>>, vector<1x32xf32>
    %cst = arith.constant dense<0.000000e+00> : vector<1x256xf32>
    %5 = tpu.matmul %4, %1, %cst {dimension_numbers = #tpu.dot_dimension_numbers<[1], [0], [0], [1], [0, 0, 1, 1], [], []>} : vector<1x32xf32>, vector<32x256xf32>, vector<1x256xf32> -> vector<1x256xf32>
    %c0_7 = arith.constant 0 : index
    %c0_8 = arith.constant 0 : index
    %6 = vector.load %arg5[%c0_7, %c0_8] : memref<1x1xf32, #tpu.memory_space<vmem>>, vector<1x1xf32>
    %7 = vector.broadcast %6 : vector<1x1xf32> to vector<1x256xf32>
    %8 = arith.addf %5, %7 : vector<1x256xf32>
    %9 = arith.negf %8 : vector<1x256xf32>
    %10 = math.exp %9 : vector<1x256xf32>
    %cst_9 = arith.constant 1.000000e+00 : f32
    %11 = vector.broadcast %cst_9 : f32 to vector<1x256xf32>
    %12 = arith.addf %11, %10 : vector<1x256xf32>
    %13 = arith.divf %11, %12 : vector<1x256xf32>
    %14 = vector.broadcast %3 : vector<32x1xf32> to vector<32x256xf32>
    %15 = arith.mulf %1, %14 : vector<32x256xf32>
    %16 = vector.broadcast %13 : vector<1x256xf32> to vector<32x256xf32>
    %17 = arith.mulf %1, %16 : vector<32x256xf32>
    %18 = arith.maximumf %15, %17 : vector<32x256xf32>
    %c0_10 = arith.constant 0 : index
    %c0_11 = arith.constant 0 : index
    %c0_12 = arith.constant 0 : index
    %19 = vector.load %arg6[%c0_10, %c0_11, %c0_12] : memref<1x32x256xf32, #tpu.memory_space<vmem>>, vector<1x32x256xf32>
    %20 = vector.shape_cast %19 : vector<1x32x256xf32> to vector<32x256xf32>
    %21 = vector.shape_cast %18 : vector<32x256xf32> to vector<1x32x256xf32>
    tpu.vector_store %arg6[%c0_10, %c0_11, %c0_12], %21 {strides = array<i32>} : memref<1x32x256xf32, #tpu.memory_space<vmem>>, vector<1x32x256xf32>,
    return
  }
  func.func @transform_0(%arg0: i32, %arg1: i32) -> (i32, i32, i32) {
    %c0_i32 = arith.constant 0 : i32
    %c0_i32_0 = arith.constant 0 : i32
    return %arg0, %c0_i32, %arg1 : i32, i32, i32
  }
  func.func @transform_1(%arg0: i32, %arg1: i32) -> (i32, i32, i32) {
    %c0_i32 = arith.constant 0 : i32
    %c0_i32_0 = arith.constant 0 : i32
    %c0_i32_1 = arith.constant 0 : i32
    return %arg0, %c0_i32, %c0_i32_0 : i32, i32, i32
  }
  func.func @transform_2(%arg0: i32, %arg1: i32) -> (i32, i32) {
    %c0_i32 = arith.constant 0 : i32
    %c0_i32_0 = arith.constant 0 : i32
    %c0_i32_1 = arith.constant 0 : i32
    return %c0_i32, %c0_i32_0 : i32, i32
  }
  func.func @transform_3(%arg0: i32, %arg1: i32) -> (i32, i32) {
    %c0_i32 = arith.constant 0 : i32
    %c0_i32_0 = arith.constant 0 : i32
    %c0_i32_1 = arith.constant 0 : i32
    return %c0_i32, %c0_i32_0 : i32, i32
  }
  func.func @transform_4(%arg0: i32, %arg1: i32) -> (i32, i32, i32) {
    %c0_i32 = arith.constant 0 : i32
    %c0_i32_0 = arith.constant 0 : i32
    return %arg0, %c0_i32, %arg1 : i32, i32, i32
  }
}

</mosaic_0001>

<llo_original>
// kernel: tpu_custom_call.1
$region0: #{tpu_custom_call.1}
  #allocation0 [shape = 'u32[]', space=smem, size = 0x4, offset = 0x4, fixed_abs, tag = 'smem constant byte address 0x4 - core index']
  #allocation1 [shape = 'u32[144,128]{1,0:T(1,128)}', space=vmem, size = 0x12000, scoped, tag = 'internal scratch']
  #allocation2 [shape = 'f32[1,1]{1,0:T(1,128)S(1)}', space=vmem, size = 0x200, scoped, tag = 'scoped memory for tpu_custom_call.1']
  %s0 = inlined_call_operand.hbm [shape: f32[2,32,256], index: 0, kind: input, shape index: {}]
  %s1 = inlined_call_operand.hbm [shape: f32[2,32,1], index: 1, kind: input, shape index: {}]
  %s2 = inlined_call_operand.hbm [shape: f32[1,32], index: 2, kind: input, shape index: {}]
  %s3 = inlined_call_operand.<no memory space> [shape: f32[1,1], index: 3, kind: input, shape index: {}]
  %s4 = inlined_call_operand.hbm [shape: f32[2,32,256], index: 4, kind: output, shape index: {}]
  %s5 = sld [smem:[#allocation0]]
  $region61: #{tpu_custom_call.1} parent=0
    _
  %s7 = ssub.s32 1, %s5
  %s8 = scalar_select 0, %s7, %s5
  %v9 = vstv %s3
  %10 = vst [vmem:[#allocation2] sm:$0x1] %v9
  $region1: #{tpu_custom_call.1} parent=0
    #allocation3 [shape = 'u8[65536]{0}', space=vmem, size = 0x10000, scoped, tag = 'input window, operand 0']
    #allocation4 [shape = 's32[2]{0}', space=sflag, size = 0x8, scoped, tag = 'scoped memory for tpu_custom_call.1']
    #allocation5 [shape = 's32[2]{0}', space=sflag, size = 0x8, scoped, tag = 'scoped memory for tpu_custom_call.1']
    #allocation6 [shape = 'u8[32768]{0}', space=vmem, size = 0x8000, scoped, tag = 'input window, operand 1']
    #allocation7 [shape = 's32[2]{0}', space=sflag, size = 0x8, scoped, tag = 'scoped memory for tpu_custom_call.1']
    #allocation8 [shape = 'u8[512]{0}', space=vmem, size = 0x400, scoped, tag = 'input window, operand 2, single buffered']
    #allocation9 [shape = 'u8[65536]{0}', space=vmem, size = 0x10000, scoped, tag = 'output window, operand 0']
    %11 = vsyncpa [#allocation4], 0
    %s12 = scalar_lea.sflag [#allocation4], 1
    %13 = vsyncpa %s12, 0
    %14 = vsyncpa [#allocation7], 0
    %s15 = scalar_lea.sflag [#allocation7], 1
    %16 = vsyncpa %s15, 0
    %17 = vsyncpa [#allocation5], 0
    %s18 = scalar_lea.sflag [#allocation5], 1
    %19 = vsyncpa %s18, 0
    loop: start=0, step=1, limit=4
    $region2: #{tpu_custom_call.1} parent=1 // loop_pre_header
      _
    $region3: #{tpu_custom_call.1} parent=1 // loop_header
      %s21 = sphi 0, %s25
      %p22 = scmp.ge.s32.totalorder %s21, 4
      %s28 = sphi 0, %s40
      %s29 = sphi 0, %s36
      %s30 = sphi 0, %s28
      %s31 = sphi 0, %s29
      %s32 = sphi 0, %s30
      %s33 = sphi 0, %s31
      %s45 = sphi 0, %s47
      %s48 = sphi 0, %s45
      %s49 = sphi 0, %s48
      %s65 = sphi 0, %s49
      %s71 = sphi 0, %s73
      %s74 = sphi 0, %s71
      %s75 = sphi 0, %s74
      %s91 = sphi 0, %s75
      %s95 = sphi 0, %s95
      %s97 = sphi 0, %s95
      %s98 = sphi 0, %s97
      %s112 = sphi 0, %s98
      %s116 = sphi 0, %s116
      %s118 = sphi 0, %s116
      %s119 = sphi 0, %s118
      %s133 = sphi 0, %s119
      %s141 = sphi 0, %s143
      %s144 = sphi 0, %s141
      %s145 = sphi 0, %s144
      %s161 = sphi 0, %s145
    $region4: #{tpu_custom_call.1} parent=1 // loop_header_branch
      %24 = sbr.rel (%p22) target = $region8
    $region5: #{tpu_custom_call.1} parent=1 // loop_body
      %s26 = ssub.s32 %s21, 1
      %s27 = ssub.s32 %s21, 2
      %s34 = sadd.s32 1, %s29
      %p35 = scmp.ge.s32.totalorder %s34, 1
      %s36 = scalar_select %p35, 0, %s34
      %s37 = sadd.s32 1, %s28
      %s38 = scalar_select %p35, %s37, %s28
      %p39 = scmp.ge.s32.totalorder %s38, 2
      %s40 = scalar_select %p39, 0, %s38
      %s41 = ssub.s32 %s28, %s40
      %s42 = ssub.s32 %s29, %s36
      %s43 = sor.u32 %s41, %s42
      %p44 = scmp.eq.s32.totalorder %s43, 0
      %s46 = sadd.s32 %s45, 1
      %s47 = scalar_select %p44, %s45, %s46
      %p50 = pneg %p44
      %p51 = scmp.eq.s32.totalorder %s21, 1
      %p52 = por %p50, %p51
      %p53 = scmp.ne.s32.totalorder %s45, %s48
      %p54 = scmp.eq.s32.totalorder %s21, 0
      %p55 = por %p53, %p54
      %p56 = scmp.ne.s32.totalorder %s45, %s48
      %p57 = scmp.eq.s32.totalorder %s26, 1
      %p58 = por %p56, %p57
      %p59 = scmp.ne.s32.totalorder %s48, %s49
      %p60 = scmp.eq.s32.totalorder %s26, 0
      %p61 = por %p59, %p60
      %p62 = scmp.ne.s32.totalorder %s48, %s49
      %p63 = scmp.eq.s32.totalorder %s27, 1
      %p64 = por %p62, %p63
      %p66 = scmp.ne.s32.totalorder %s49, %s65
      %p67 = scmp.eq.s32.totalorder %s27, 0
      %p68 = por %p66, %p67
      %s69 = ssub.s32 %s28, %s40
      %p70 = scmp.eq.s32.totalorder %s69, 0
      %s72 = sadd.s32 %s71, 1
      %s73 = scalar_select %p70, %s71, %s72
      %p76 = pneg %p70
      %p77 = scmp.eq.s32.totalorder %s21, 1
      %p78 = por %p76, %p77
      %p79 = scmp.ne.s32.totalorder %s71, %s74
      %p80 = scmp.eq.s32.totalorder %s21, 0
      %p81 = por %p79, %p80
      %p82 = scmp.ne.s32.totalorder %s71, %s74
      %p83 = scmp.eq.s32.totalorder %s26, 1
      %p84 = por %p82, %p83
      %p85 = scmp.ne.s32.totalorder %s74, %s75
      %p86 = scmp.eq.s32.totalorder %s26, 0
      %p87 = por %p85, %p86
      %p88 = scmp.ne.s32.totalorder %s74, %s75
      %p89 = scmp.eq.s32.totalorder %s27, 1
      %p90 = por %p88, %p89
      %p92 = scmp.ne.s32.totalorder %s75, %s91
      %p93 = scmp.eq.s32.totalorder %s27, 0
      %p94 = por %p92, %p93
      %s96 = sadd.s32 %s95, 1
      %p99 = scmp.eq.s32.totalorder %s21, 1
      %p100 = scmp.ne.s32.totalorder %s95, %s97
      %p101 = scmp.eq.s32.totalorder %s21, 0
      %p102 = por %p100, %p101
      %p103 = scmp.ne.s32.totalorder %s95, %s97
      %p104 = scmp.eq.s32.totalorder %s26, 1
      %p105 = por %p103, %p104
      %p106 = scmp.ne.s32.totalorder %s97, %s98
      %p107 = scmp.eq.s32.totalorder %s26, 0
      %p108 = por %p106, %p107
      %p109 = scmp.ne.s32.totalorder %s97, %s98
      %p110 = scmp.eq.s32.totalorder %s27, 1
      %p111 = por %p109, %p110
      %p113 = scmp.ne.s32.totalorder %s98, %s112
      %p114 = scmp.eq.s32.totalorder %s27, 0
      %p115 = por %p113, %p114
      %s117 = sadd.s32 %s116, 1
      %p120 = scmp.eq.s32.totalorder %s21, 1
      %p121 = scmp.ne.s32.totalorder %s116, %s118
      %p122 = scmp.eq.s32.totalorder %s21, 0
      %p123 = por %p121, %p122
      %p124 = scmp.ne.s32.totalorder %s116, %s118
      %p125 = scmp.eq.s32.totalorder %s26, 1
      %p126 = por %p124, %p125
      %p127 = scmp.ne.s32.totalorder %s118, %s119
      %p128 = scmp.eq.s32.totalorder %s26, 0
      %p129 = por %p127, %p128
      %p130 = scmp.ne.s32.totalorder %s118, %s119
      %p131 = scmp.eq.s32.totalorder %s27, 1
      %p132 = por %p130, %p131
      %p134 = scmp.ne.s32.totalorder %s119, %s133
      %p135 = scmp.eq.s32.totalorder %s27, 0
      %p136 = por %p134, %p135
      %s137 = ssub.s32 %s28, %s40
      %s138 = ssub.s32 %s29, %s36
      %s139 = sor.u32 %s137, %s138
      %p140 = scmp.eq.s32.totalorder %s139, 0
      %s142 = sadd.s32 %s141, 1
      %s143 = scalar_select %p140, %s141, %s142
      %p146 = pneg %p140
      %p147 = scmp.eq.s32.totalorder %s21, 1
      %p148 = por %p146, %p147
      %p149 = scmp.ne.s32.totalorder %s141, %s144
      %p150 = scmp.eq.s32.totalorder %s21, 0
      %p151 = por %p149, %p150
      %p152 = scmp.ne.s32.totalorder %s141, %s144
      %p153 = scmp.eq.s32.totalorder %s26, 1
      %p154 = por %p152, %p153
      %p155 = scmp.ne.s32.totalorder %s144, %s145
      %p156 = scmp.eq.s32.totalorder %s26, 0
      %p157 = por %p155, %p156
      %p158 = scmp.ne.s32.totalorder %s144, %s145
      %p159 = scmp.eq.s32.totalorder %s27, 1
      %p160 = por %p158, %p159
      %p162 = scmp.ne.s32.totalorder %s145, %s161
      %p163 = scmp.eq.s32.totalorder %s27, 0
      %p164 = por %p162, %p163
      %p165 = scmp.le.s32.totalorder 1, %s21
      %p166 = scmp.lt.s32.totalorder %s21, 3
      %p167 = pnand %p165, %p166
      %p168 = pneg %p167
      // Predicated region
      $region9: #{tpu_custom_call.1} parent=5 // pred_check
        _
      $region10: #{tpu_custom_call.1} parent=5 // pred_check_branch
        %170 = sbr.rel (%p167) target = $region12
      $region11: #{tpu_custom_call.1} parent=5 // pred_region
        %s171 = ssub.s32 %s21, 1
        // Predicated region
        $region13: #{tpu_custom_call.1} parent=11 // pred_check
          %p172 = pneg %p108
        $region14: #{tpu_custom_call.1} parent=11 // pred_check_branch
          %174 = sbr.rel (%p172) target = $region16
        $region15: #{tpu_custom_call.1} parent=11 // pred_region
          %s176 = ssub.s32 16, 16
          %177 = vsyncadd [#allocation7], %s176
          %s179 = sshll.u32 [#allocation8], 4
          %s180 = int_to_ptr.vmem [resolvable:$true] %s179
          %182 = dma.hbm_to_vmem [thread:$0]  %s2, 16, %s180, [#allocation7]
        $region16: #{tpu_custom_call.1} parent=11 // pred_fallthru
          _
        // Predicated region
        $region17: #{tpu_custom_call.1} parent=11 // pred_check
          %p183 = pneg %p129
        $region18: #{tpu_custom_call.1} parent=11 // pred_check_branch
          %185 = sbr.rel (%p183) target = $region20
        $region19: #{tpu_custom_call.1} parent=11 // pred_region
          _
        $region20: #{tpu_custom_call.1} parent=11 // pred_fallthru
          _
      $region12: #{tpu_custom_call.1} parent=5 // pred_fallthru
        _
      %p186 = scmp.lt.s32.totalorder %s21, 2
      // Predicated region
      $region21: #{tpu_custom_call.1} parent=5 // pred_check
        %p187 = pneg %p186
      $region22: #{tpu_custom_call.1} parent=5 // pred_check_branch
        %189 = sbr.rel (%p187) target = $region24
      $region23: #{tpu_custom_call.1} parent=5 // pred_region
        // Predicated region
        $region25: #{tpu_custom_call.1} parent=23 // pred_check
          %p190 = pneg %p55
        $region26: #{tpu_custom_call.1} parent=23 // pred_check_branch
          %192 = sbr.rel (%p190) target = $region28
        $region27: #{tpu_custom_call.1} parent=23 // pred_region
          %s193 = sand.u32 %s45, 1
          %s194 = scalar_lea.sflag [#allocation4], %s193
          %s195 = sand.u32 %s45, 1
          %s196 = smul.addr %s195, 64
          %s197 = scalar_lea.vmem [#allocation3], %s196
          %s198 = smul.u32 2, %s29
          %s200 = ssub.s32 1024, 1024
          %201 = vsyncadd %s194, %s200
          %s202 = smul.addr %s28, 8
          %s203 = sadd.s32 %s198, %s202
          %s204 = smul.addr %s203, 128
          %s205 = scalar_lea.hbm %s0, %s204
          %s206 = sshll.u32 %s197, 4
          %s207 = int_to_ptr.vmem [resolvable:$true] %s206
          %212 = dma.hbm_to_vmem [thread:$0]  %s205, 1024, %s207, %s194, 256, 256, 16
        $region28: #{tpu_custom_call.1} parent=23 // pred_fallthru
          _
        // Predicated region
        $region29: #{tpu_custom_call.1} parent=23 // pred_check
          %p213 = pneg %p81
        $region30: #{tpu_custom_call.1} parent=23 // pred_check_branch
          %215 = sbr.rel (%p213) target = $region32
        $region31: #{tpu_custom_call.1} parent=23 // pred_region
          %s216 = sand.u32 %s21, 1
          %s217 = scalar_lea.sflag [#allocation7], %s216
          %s218 = sand.u32 %s71, 1
          %s219 = smul.addr %s218, 32
          %s220 = scalar_lea.vmem [#allocation6], %s219
          %s222 = ssub.s32 512, 512
          %223 = vsyncadd %s217, %s222
          %s224 = smul.addr %s28, 4
          %s225 = smul.addr %s224, 128
          %s226 = scalar_lea.hbm %s1, %s225
          %s227 = sshll.u32 %s220, 4
          %s228 = int_to_ptr.vmem [resolvable:$true] %s227
          %233 = dma.hbm_to_vmem [thread:$0]  %s226, 512, %s228, %s217, 128, 128, 8
        $region32: #{tpu_custom_call.1} parent=23 // pred_fallthru
          _
      $region24: #{tpu_custom_call.1} parent=5 // pred_fallthru
        _
      %p234 = scmp.le.s32.totalorder 1, %s21
      %p235 = scmp.lt.s32.totalorder %s21, 3
      %p236 = pnand %p234, %p235
      %p237 = pneg %p236
      // Predicated region
      $region33: #{tpu_custom_call.1} parent=5 // pred_check
        _
      $region34: #{tpu_custom_call.1} parent=5 // pred_check_branch
        %239 = sbr.rel (%p236) target = $region36
      $region35: #{tpu_custom_call.1} parent=5 // pred_region
        %s240 = ssub.s32 %s21, 1
        %s241 = sand.u32 %s48, 1
        %s242 = scalar_lea.sflag [#allocation4], %s241
        %s243 = sand.u32 %s48, 1
        %s244 = smul.addr %s243, 64
        %s245 = scalar_lea.vmem [#allocation3], %s244
        // Predicated region
        $region37: #{tpu_custom_call.1} parent=35 // pred_check
          %p246 = pneg %p61
        $region38: #{tpu_custom_call.1} parent=35 // pred_check_branch
          %248 = sbr.rel (%p246) target = $region40
        $region39: #{tpu_custom_call.1} parent=35 // pred_region
          %249 = dma.done %s242, 1024
        $region40: #{tpu_custom_call.1} parent=35 // pred_fallthru
          _
        %s250 = sand.u32 %s26, 1
        %s251 = scalar_lea.sflag [#allocation7], %s250
        %s252 = sand.u32 %s74, 1
        %s253 = smul.addr %s252, 32
        %s254 = scalar_lea.vmem [#allocation6], %s253
        // Predicated region
        $region41: #{tpu_custom_call.1} parent=35 // pred_check
          %p255 = pneg %p87
        $region42: #{tpu_custom_call.1} parent=35 // pred_check_branch
          %257 = sbr.rel (%p255) target = $region44
        $region43: #{tpu_custom_call.1} parent=35 // pred_region
          %258 = dma.done %s251, 512
        $region44: #{tpu_custom_call.1} parent=35 // pred_fallthru
          _
        // Predicated region
        $region45: #{tpu_custom_call.1} parent=35 // pred_check
          %p259 = pneg %p108
        $region46: #{tpu_custom_call.1} parent=35 // pred_check_branch
          %261 = sbr.rel (%p259) target = $region48
        $region47: #{tpu_custom_call.1} parent=35 // pred_region
          %262 = dma.done [#allocation7], 16
        $region48: #{tpu_custom_call.1} parent=35 // pred_fallthru
          _
        %s263 = sand.u32 %s48, 1
        %s264 = scalar_lea.sflag [#allocation4], %s263
        %s265 = sand.u32 %s48, 1
        %s266 = smul.addr %s265, 64
        %s267 = scalar_lea.vmem [#allocation3], %s266
        %p268 = pneg %p61
        %p269 = pneg %p58
        %s270 = sand.u32 %s26, 1
        %s271 = scalar_lea.sflag [#allocation7], %s270
        %s272 = sand.u32 %s74, 1
        %s273 = smul.addr %s272, 32
        %s274 = scalar_lea.vmem [#allocation6], %s273
        %p275 = pneg %p87
        %p276 = pneg %p84
        %p277 = pneg %p108
        %p278 = pneg %p105
        %p279 = pneg %p129
        %p280 = pneg %p126
        %p281 = pneg %p157
        %p282 = pneg %p154
        %s283 = sand.u32 %s144, 1
        %s284 = scalar_lea.sflag [#allocation5], %s283
        %s285 = sand.u32 %s144, 1
        %s286 = smul.addr %s285, 64
        %s287 = scalar_lea.vmem [#allocation9], %s286
        %s288 = smul.u32 2, %s31
        %s289 = smul.u32 2, %s31
        %v290 = vld [vmem:[%s245] sm:$0xff]
        %v291 = vld [vmem:[%s245 + $0x8] sm:$0xff]
        %v292 = vld [vmem:[%s245 + $0x10] sm:$0xff]
        %v293 = vld [vmem:[%s245 + $0x18] sm:$0xff]
        %v294 = vld [vmem:[%s245 + $0x20] sm:$0xff]
        %v295 = vld [vmem:[%s245 + $0x28] sm:$0xff]
        %v296 = vld [vmem:[%s245 + $0x30] sm:$0xff]
        %v297 = vld [vmem:[%s245 + $0x38] sm:$0xff]
        %v298 = vld [vmem:[%s254] sm:$0xff]
        %v299 = vld [vmem:[%s254 + $0x8] sm:$0xff]
        %v300 = vld [vmem:[%s254 + $0x10] sm:$0xff]
        %v301 = vld [vmem:[%s254 + $0x18] sm:$0xff]
        %v302 = vld [vmem:[#allocation8] sm:$0x1]
        %v303 = vld [vmem:[#allocation2] sm:$0x1]
        %305 = vset.pattern.permute.xlu0 0
        %306 = vperm.xlu0 %305, %v303
        %v307 = vpop.permute.xlu0 %306
        %v309 = vlaneseq
        %v310 = vshrl.u32 %v309, 7
        %v311 = vsub.s32 0, %v310
        %v312 = vrot.slane %v307, %v311
        %vm313 = vcmask 261120
        %v315 = vsel %vm313, %v302, 0
        %317 = vmatprep.subr.mxu0 %v291
        %318 = vmatpush1.msra.mxu0 %v290
        %319 = vmatprep.subr.mxu0 %v293
        %320 = vmatpush1.msra.mxu0 %v292
        %321 = vmatprep.subr.mxu0 %v295
        %322 = vmatpush1.msra.mxu0 %v294
        %323 = vmatprep.subr.mxu0 %v297
        %324 = vmatpush1.msra.mxu0 %v296
        %325 = vmatprep.subr.mxu0 0.0
        %326 = vmatpush1.msra.mxu0 0.0
        %327 = vmatprep.subr.mxu0 0.0
        %328 = vmatpush1.msra.mxu0 0.0
        %329 = vmatprep.subr.mxu0 0.0
        %330 = vmatpush1.msra.mxu0 0.0
        %331 = vmatprep.subr.mxu0 0.0
        %332 = vmatpush1.msra.mxu0 0.0
        %333 = vmatprep.subr.mxu0 0.0
        %334 = vmatpush1.msra.mxu0 0.0
        %335 = vmatprep.subr.mxu0 0.0
        %336 = vmatpush1.msra.mxu0 0.0
        %337 = vmatprep.subr.mxu0 0.0
        %338 = vmatpush1.msra.mxu0 0.0
        %339 = vmatprep.subr.mxu0 0.0
        %340 = vmatpush1.msra.mxu0 0.0
        %341 = vmatprep.subr.mxu0 0.0
        %342 = vmatpush1.msra.mxu0 0.0
        %343 = vmatprep.subr.mxu0 0.0
        %344 = vmatpush1.msra.mxu0 0.0
        %345 = vmatprep.subr.mxu0 0.0
        %346 = vmatpush1.msra.mxu0 0.0
        %347 = vmatprep.subr.mxu0 0.0
        %348 = vmatpush1.msra.mxu0 0.0
        %349 = vmatprep.subr.mxu0 0.0
        %350 = vmatpush1.msra.mxu0 0.0
        %351 = vmatprep.subr.mxu0 0.0
        %352 = vmatpush1.msra.mxu0 0.0
        %353 = vmatprep.subr.mxu0 0.0
        %354 = vmatpush1.msra.mxu0 0.0
        %355 = vmatprep.subr.mxu0 0.0
        %356 = vmatpush1.msra.mxu0 0.0
        %357 = vmatprep.subr.mxu0 0.0
        %358 = vmatpush1.msra.mxu0 0.0
        %359 = vmatprep.subr.mxu0 0.0
        %360 = vmatpush1.msra.mxu0 0.0
        %361 = vmatprep.subr.mxu0 0.0
        %362 = vmatpush1.msra.mxu0 0.0
        %363 = vmatprep.subr.mxu0 0.0
        %364 = vmatpush1.msra.mxu0 0.0
        %365 = vmatprep.subr.mxu0 0.0
        %366 = vmatpush1.msra.mxu0 0.0
        %367 = vmatprep.subr.mxu0 0.0
        %368 = vmatpush1.msra.mxu0 0.0
        %369 = vmatprep.subr.mxu0 0.0
        %370 = vmatpush1.msra.mxu0 0.0
        %371 = vmatprep.subr.mxu0 0.0
        %372 = vmatpush1.msra.mxu0 0.0
        %373 = vmatprep.subr.mxu0 0.0
        %374 = vmatpush1.msra.mxu0 0.0
        %375 = vmatprep.subr.mxu0 0.0
        %376 = vmatpush1.msra.mxu0 0.0
        %377 = vmatprep.subr.mxu0 0.0
        %378 = vmatpush1.msra.mxu0 0.0
        %379 = vmatprep.subr.mxu0 0.0
        %380 = vmatpush1.msra.mxu0 0.0
        %381 = vmatprep.mubr.f32.mxu0 0.0
        %382 = vmatmul.mubr.f32.gmra.mrb[0].mxu0 %v315
        %v383 = vpop.f32.mrb[0].mxu0
        %v384 = vadd.f32 %v312, %v383
        %v385 = vpop.f32.mrb[0].mxu0
        %v386 = vadd.f32 %v312, %v385
        %387 = vdwg.mxu0
        %v388 = vxor.u32 %v384, 2147483648
        %v389 = vxor.u32 %v386, 2147483648
        %v390 = vmul.f32 %v388, 1.442695
        %v391 = vpow.pop %v390
        %v392 = vmul.f32 %v389, 1.442695
        %v393 = vpow.pop %v392
        %v394 = vadd.f32 %v391, 1.0
        %v395 = vadd.f32 %v393, 1.0
        %v396 = vrcp.pop %v394
        %v397 = vmul.f32 1.0, %v396
        %v398 = vrcp.pop %v395
        %v399 = vmul.f32 1.0, %v398
        %401 = vset.pattern.permute.xlu0 0
        %402 = vperm.xlu0 %401, %v298
        %v403 = vpop.permute.xlu0 %402
        %406 = vset.pattern.permute.xlu0 0
        %407 = vperm.xlu0 %406, %v299
        %v408 = vpop.permute.xlu0 %407
        %411 = vset.pattern.permute.xlu0 0
        %412 = vperm.xlu0 %411, %v300
        %v413 = vpop.permute.xlu0 %412
        %416 = vset.pattern.permute.xlu0 0
        %417 = vperm.xlu0 %416, %v301
        %v418 = vpop.permute.xlu0 %417
        %v420 = vmul.f32 %v290, %v403
        %v421 = vmul.f32 %v291, %v403
        %v422 = vmul.f32 %v292, %v408
        %v423 = vmul.f32 %v293, %v408
        %v424 = vmul.f32 %v294, %v413
        %v425 = vmul.f32 %v295, %v413
        %v426 = vmul.f32 %v296, %v418
        %v427 = vmul.f32 %v297, %v418
        %v428 = vlaneseq
        %v429 = vshrl.u32 %v428, 7
        %v430 = vsub.s32 0, %v429
        %v431 = vrot.slane %v397, %v430
        %v432 = vlaneseq
        %v433 = vshrl.u32 %v432, 7
        %v434 = vsub.s32 0, %v433
        %v435 = vrot.slane %v399, %v434
        %v436 = vmul.f32 %v290, %v431
        %v437 = vmul.f32 %v291, %v435
        %v438 = vmul.f32 %v292, %v431
        %v439 = vmul.f32 %v293, %v435
        %v440 = vmul.f32 %v294, %v431
        %v441 = vmul.f32 %v295, %v435
        %v442 = vmul.f32 %v296, %v431
        %v443 = vmul.f32 %v297, %v435
        %v444 = vmax.f32 %v420, %v436
        %v445 = vmax.f32 %v421, %v437
        %v446 = vmax.f32 %v422, %v438
        %v447 = vmax.f32 %v423, %v439
        %v448 = vmax.f32 %v424, %v440
        %v449 = vmax.f32 %v425, %v441
        %v450 = vmax.f32 %v426, %v442
        %v451 = vmax.f32 %v427, %v443
        %452 = vst [vmem:[%s287] sm:$0xff] %v444
        %453 = vst [vmem:[%s287 + $0x8] sm:$0xff] %v445
        %454 = vst [vmem:[%s287 + $0x10] sm:$0xff] %v446
        %455 = vst [vmem:[%s287 + $0x18] sm:$0xff] %v447
        %456 = vst [vmem:[%s287 + $0x20] sm:$0xff] %v448
        %457 = vst [vmem:[%s287 + $0x28] sm:$0xff] %v449
        %458 = vst [vmem:[%s287 + $0x30] sm:$0xff] %v450
        %459 = vst [vmem:[%s287 + $0x38] sm:$0xff] %v451
        %s460 = sand.u32 %s144, 1
        %s461 = scalar_lea.sflag [#allocation5], %s460
        %s462 = sand.u32 %s144, 1
        %s463 = smul.addr %s462, 64
        %s464 = scalar_lea.vmem [#allocation9], %s463
        // Predicated region
        $region49: #{tpu_custom_call.1} parent=35 // pred_check
          %p465 = pneg %p154
        $region50: #{tpu_custom_call.1} parent=35 // pred_check_branch
          %467 = sbr.rel (%p465) target = $region52
        $region51: #{tpu_custom_call.1} parent=35 // pred_region
          %s468 = smul.u32 2, %s31
          %s470 = ssub.s32 1024, 1024
          %471 = vsyncadd %s461, %s470
          %s472 = smul.addr %s30, 8
          %s473 = sadd.s32 %s468, %s472
          %s474 = smul.addr %s473, 128
          %s475 = scalar_lea.hbm %s4, %s474
          %s476 = sshll.u32 %s464, 4
          %s477 = int_to_ptr.vmem [resolvable:$true] %s476
          %482 = dma.vmem_to_hbm [thread:$0]  %s477, 1024, %s475, %s461, 256, 256, 16
        $region52: #{tpu_custom_call.1} parent=35 // pred_fallthru
          _
      $region36: #{tpu_custom_call.1} parent=5 // pred_fallthru
        _
      %p483 = scmp.le.s32.totalorder 2, %s21
      // Predicated region
      $region53: #{tpu_custom_call.1} parent=5 // pred_check
        %p484 = pneg %p483
      $region54: #{tpu_custom_call.1} parent=5 // pred_check_branch
        %486 = sbr.rel (%p484) target = $region56
      $region55: #{tpu_custom_call.1} parent=5 // pred_region
        %s487 = ssub.s32 %s21, 2
        // Predicated region
        $region57: #{tpu_custom_call.1} parent=55 // pred_check
          %p488 = pneg %p160
        $region58: #{tpu_custom_call.1} parent=55 // pred_check_branch
          %490 = sbr.rel (%p488) target = $region60
        $region59: #{tpu_custom_call.1} parent=55 // pred_region
          %s491 = sand.u32 %s145, 1
          %s492 = scalar_lea.sflag [#allocation5], %s491
          %s493 = sand.u32 %s145, 1
          %s494 = smul.addr %s493, 64
          %s495 = scalar_lea.vmem [#allocation9], %s494
          %496 = dma.done %s492, 1024
        $region60: #{tpu_custom_call.1} parent=55 // pred_fallthru
          _
      $region56: #{tpu_custom_call.1} parent=5 // pred_fallthru
        _
    $region6: #{tpu_custom_call.1} parent=1 // loop_footer
      %s25 = sadd.s32 1, %s21
    $region7: #{tpu_custom_call.1} parent=1 // loop_footer_branch
      %20 = sbr.rel target = $region3
    $region8: #{tpu_custom_call.1} parent=1 // loop_exit
      _
    %497 = vsyncpa [#allocation4], 1
    %s498 = scalar_lea.sflag [#allocation4], 1
    %499 = vsyncpa %s498, 1
    %500 = vsyncpa [#allocation7], 1
    %s501 = scalar_lea.sflag [#allocation7], 1
    %502 = vsyncpa %s501, 1
    %503 = vsyncpa [#allocation5], 1
    %s504 = scalar_lea.sflag [#allocation5], 1
    %505 = vsyncpa %s504, 1

</llo_original>
